<compile_context>
chip_gen: v5e
topology: v5e:2x2
jax: 0.10.0
libtpu: 0.0.40
codegen_flags: <defaults>
</compile_context>

<pallas_src>
import functools

import jax
import jax.numpy as jnp
from jax.experimental import pallas as pl
from jax.experimental.pallas import tpu as pltpu

_LANE = 128                        # lane width (last-dim granularity)
_SUBLANE = 8                       # f32 sublane pack
_MAX_LANE_TILE = 2048              # max time-tile (lanes) per block
_MAX_ROW_TILE = 256                # max row-tile (sublanes) per block
_TILE_BUDGET = 16 * 1024 * 1024    # double-buffered blocks + f32 temporaries
_VMEM_LIMIT = 32 * 1024 * 1024     # explicit scoped-VMEM limit (ok on v5e..v7x)


def _snake_kernel(x_ref, alpha_ref, o_ref, *, sin_dtype):
    # x_ref / o_ref: (TR, TT) tile of the (B*C, T) slab
    # alpha_ref:     (TR, 1) per-row parameter (float32)
    a = alpha_ref[...]                                # (TR, 1), lane-broadcasts
    inv_a = pl.reciprocal(a, approx=False)            # exact 1/alpha; tiny block, EUP idle
    x = x_ref[...].astype(jnp.float32)
    if sin_dtype == jnp.float32:
        s = jnp.sin(a * x)
        sin_sq = s * s
    else:
        # Reduced-precision sin chain: only worth it on v6e/v7x when the VALU
        # slot binds; validate accuracy for the expected |alpha*x| range.
        s = jnp.sin(a.astype(sin_dtype) * x_ref[...].astype(sin_dtype))
        sin_sq = (s * s).astype(jnp.float32)
    o_ref[...] = (x + sin_sq * inv_a).astype(o_ref.dtype)


def _round_down(v: int, m: int) -> int:
    return (v // m) * m


def _choose_tiles(rows: int, T: int, itemsize: int):
    """Pick (row_tile, time_tile): (pack,128)-aligned, VMEM-bounded, >=2 programs."""
    # Sublane pack of the input dtype: 8 for f32, 16 for bf16, 32 for int8/fp8.
    row_pack = max(_SUBLANE, 32 // itemsize)

    # Lane (time) tile: multiple of 128 (cdiv grid -> only last block ragged);
    # full extent only when T < 128 (full-extent blocks waive divisibility).
    tt = T if T < _LANE else min(_MAX_LANE_TILE, _round_down(T, _LANE))
    # Row tile: multiple of the sublane pack, or full extent for tiny row counts.
    tr = rows if rows < row_pack else min(_MAX_ROW_TILE, _round_down(rows, row_pack))

    # VMEM estimate: double-buffered input + output blocks, plus headroom for
    # the full-tile f32 temporaries of the sin chain (not covered by BlockSpec).
    def vmem_est(tr_, tt_):
        return 4 * tr_ * tt_ * itemsize + 4 * tr_ * tt_ * 4

    while vmem_est(tr, tt) > _TILE_BUDGET:
        if tt > _LANE and tt % _LANE == 0:
            tt = max(_LANE, _round_down(tt // 2, _LANE))
        elif tr > row_pack and tr % row_pack == 0:
            tr = max(row_pack, _round_down(tr // 2, row_pack))
        else:
            break

    # Megacore (v7x): ensure the parallel grid has >= 2 programs when the array
    # is big enough to split; prefer splitting rows (axis 0).
    while pl.cdiv(rows, tr) * pl.cdiv(T, tt) < 2:
        if tr >= 2 * row_pack and tr % row_pack == 0:
            tr = max(row_pack, _round_down(tr // 2, row_pack))
        elif tt >= 2 * _LANE and tt % _LANE == 0:
            tt = max(_LANE, _round_down(tt // 2, _LANE))
        else:
            break

    return tr, tt


def snake(x: jax.Array, alpha: jax.Array, *, sin_dtype=jnp.float32) -> jax.Array:
    """Snake activation: x + sin(alpha * x)^2 / alpha.

    Args:
        x:         (B, C, T) input.
        alpha:     (1, C, 1) per-channel parameter (same layout as the PyTorch
                   nn.Parameter); (C,) or (C, 1) also accepted.
        sin_dtype: dtype of the sin/square chain. Keep jnp.float32 (default,
                   matches the reference); jnp.bfloat16 is a v6e/v7x-only lever
                   when the kernel is VALU-bound.

    Returns:
        (B, C, T) output, same dtype as x.
    """
    B, C, T = x.shape
    rows = B * C

    if alpha.shape not in ((1, C, 1), (C,), (C, 1)):
        raise ValueError(
            f"alpha must have shape (1, {C}, 1) (or ({C},) / ({C}, 1)); got {alpha.shape}"
        )

    # Lane/sublane-dense layout: rows = batch*channels, time on the lane axis.
    x2d = x.reshape(rows, T)

    # One f32 alpha per row.  The reciprocal is computed in-kernel.
    # TODO(synk): PyTorch reference has no eps; alpha == 0 yields inf/NaN here too.
    a_rows = jnp.broadcast_to(
        alpha.reshape(1, C).astype(jnp.float32), (B, C)
    ).reshape(rows, 1)

    itemsize = jnp.dtype(x.dtype).itemsize
    tr, tt = _choose_tiles(rows, T, itemsize)
    grid = (pl.cdiv(rows, tr), pl.cdiv(T, tt))

    n_elems = rows * T
    cost = pl.CostEstimate(
        flops=4 * n_elems,                                  # mul, square, mul(1/a), add
        transcendentals=n_elems,                            # sin
        bytes_accessed=2 * n_elems * itemsize + rows * 4,   # x in, out, alpha
    )

    out2d = pl.pallas_call(
        functools.partial(_snake_kernel, sin_dtype=sin_dtype),
        out_shape=jax.ShapeDtypeStruct((rows, T), x.dtype),
        grid_spec=pltpu.PrefetchScalarGridSpec(
            num_scalar_prefetch=0,
            grid=grid,
            in_specs=[
                pl.BlockSpec((tr, tt), lambda r, t: (r, t)),
                pl.BlockSpec((tr, 1), lambda r, t: (r, 0)),
            ],
            out_specs=pl.BlockSpec((tr, tt), lambda r, t: (r, t)),
        ),
        compiler_params=pltpu.CompilerParams(
            dimension_semantics=("parallel", "parallel"),
            vmem_limit_bytes=_VMEM_LIMIT,
        ),
        cost_estimate=cost,
    )(x2d, a_rows)

    return out2d.reshape(B, C, T)


def snake_ref(x, alpha):
    """Pure-JAX reference (mirrors the PyTorch forward)."""
    return x + jnp.sin(alpha * x) ** 2 / alpha


if __name__ == "__main__":
    B, C, T = 2, 4, 16

    key = jax.random.PRNGKey(0)
    kx, ka = jax.random.split(key)
    x = jax.random.normal(kx, (B, C, T), dtype=jnp.float32)

    # Parameter init matches nn.Parameter(torch.ones((1, channels, 1))).
    alpha_ones = jnp.ones((1, C, 1), dtype=jnp.float32)
    out = jax.block_until_ready(snake(x, alpha_ones))
    ref = snake_ref(x, alpha_ones)
    assert out.shape == (B, C, T)
    assert jnp.allclose(out, ref, atol=1e-5, rtol=1e-5), "mismatch (alpha=1)"

    # Non-trivial per-channel alpha.
    alpha_rand = jax.random.uniform(
        ka, (1, C, 1), dtype=jnp.float32, minval=0.5, maxval=2.0
    )
    out2 = jax.block_until_ready(snake(x, alpha_rand))
    ref2 = snake_ref(x, alpha_rand)
    assert jnp.allclose(out2, ref2, atol=1e-5, rtol=1e-5), "mismatch (alpha=rand)"

    # Exercise the cdiv / ragged-last-block path (T >= 128, not a multiple of 128).
    T2 = 200
    x2 = jax.random.normal(kx, (B, C, T2), dtype=jnp.float32)
    out3 = jax.block_until_ready(snake(x2, alpha_rand))
    ref3 = snake_ref(x2, alpha_rand)
    assert out3.shape == (B, C, T2)
    assert jnp.allclose(out3, ref3, atol=1e-5, rtol=1e-5), "mismatch (ragged T)"

    print("KERNEL_OK")
</pallas_src>

<mosaic_0001>
module attributes {stable_mosaic.version = 11 : i64} {
  func.func @_snake_kernel(%arg0: i32, %arg1: i32, %arg2: memref<8x16xf32, #tpu.memory_space<vmem>>, %arg3: memref<8x1xf32, #tpu.memory_space<vmem>>, %arg4: memref<8x16xf32, #tpu.memory_space<vmem>>) attributes {dimension_semantics = [#tpu.dimension_semantics<parallel>, #tpu.dimension_semantics<parallel>], iteration_bounds = array<i64: 1, 1>, scalar_prefetch = 0 : i64, scratch_operands = 0 : i64, tpu.core_type = #tpu.core_type<tc>, window_params = [{transform_indices = @transform_0, window_bounds = array<i64: 8, 16>}, {transform_indices = @transform_1, window_bounds = array<i64: 8, 1>}, {transform_indices = @transform_2, window_bounds = array<i64: 8, 16>}]} {
    %c0 = arith.constant 0 : index
    %c0_0 = arith.constant 0 : index
    %0 = vector.load %arg3[%c0, %c0_0] : memref<8x1xf32, #tpu.memory_space<vmem>>, vector<8x1xf32>
    %1 = tpu.reciprocal %0 : vector<8x1xf32> -> vector<8x1xf32>
    %c0_1 = arith.constant 0 : index
    %c0_2 = arith.constant 0 : index
    %2 = vector.load %arg2[%c0_1, %c0_2] : memref<8x16xf32, #tpu.memory_space<vmem>>, vector<8x16xf32>
    %3 = vector.broadcast %0 : vector<8x1xf32> to vector<8x16xf32>
    %4 = arith.mulf %3, %2 : vector<8x16xf32>
    %5 = math.sin %4 : vector<8x16xf32>
    %6 = arith.mulf %5, %5 : vector<8x16xf32>
    %7 = vector.broadcast %1 : vector<8x1xf32> to vector<8x16xf32>
    %8 = arith.mulf %6, %7 : vector<8x16xf32>
    %9 = arith.addf %2, %8 : vector<8x16xf32>
    %c0_3 = arith.constant 0 : index
    %c0_4 = arith.constant 0 : index
    %10 = vector.load %arg4[%c0_3, %c0_4] : memref<8x16xf32, #tpu.memory_space<vmem>>, vector<8x16xf32>
    tpu.vector_store %arg4[%c0_3, %c0_4], %9 {strides = array<i32>} : memref<8x16xf32, #tpu.memory_space<vmem>>, vector<8x16xf32>,
    return
  }
  func.func @transform_0(%arg0: i32, %arg1: i32) -> (i32, i32) {
    %c0_i32 = arith.constant 0 : i32
    return %arg0, %arg1 : i32, i32
  }
  func.func @transform_1(%arg0: i32, %arg1: i32) -> (i32, i32) {
    %c0_i32 = arith.constant 0 : i32
    %c0_i32_0 = arith.constant 0 : i32
    return %arg0, %c0_i32 : i32, i32
  }
  func.func @transform_2(%arg0: i32, %arg1: i32) -> (i32, i32) {
    %c0_i32 = arith.constant 0 : i32
    return %arg0, %arg1 : i32, i32
  }
}

</mosaic_0001>

<llo_original>
// kernel: tpu_custom_call.1
$region0: #{tpu_custom_call.1}
  #allocation0 [shape = 'u32[]', space=smem, size = 0x4, offset = 0x4, fixed_abs, tag = 'smem constant byte address 0x4 - core index']
  #allocation1 [shape = 'u32[72,128]{1,0:T(1,128)}', space=vmem, size = 0x9000, scoped, tag = 'internal scratch']
  %s0 = inlined_call_operand.vmem [shape: f32[8,16], index: 0, kind: input, shape index: {}]
  %s1 = inlined_call_operand.vmem [shape: f32[8,1], index: 1, kind: input, shape index: {}]
  %s2 = inlined_call_operand.hbm [shape: f32[8,16], index: 2, kind: output, shape index: {}]
  %s3 = sld [smem:[#allocation0]]
  $region18: #{tpu_custom_call.1} parent=0
    _
  %s5 = ssub.s32 1, %s3
  %s6 = scalar_select 0, %s5, %s3
  $region1: #{tpu_custom_call.1} parent=0
    #allocation2 [shape = 'u8[4096]{0}', space=vmem, size = 0x1000, scoped, tag = 'output window, operand 0, single buffered']
    #allocation3 [shape = 's32[1]{0}', space=sflag, size = 0x4, scoped, tag = 'scoped memory for tpu_custom_call.1']
    %7 = vsyncpa [#allocation3], 0
    // Predicated region
    $region2: #{tpu_custom_call.1} parent=1 // pred_check
      _
    $region3: #{tpu_custom_call.1} parent=1 // pred_check_branch
      %9 = sbr.rel (0) target = $region5
    $region4: #{tpu_custom_call.1} parent=1 // pred_region
      _
    $region5: #{tpu_custom_call.1} parent=1 // pred_fallthru
      _
    // Predicated region
    $region6: #{tpu_custom_call.1} parent=1 // pred_check
      _
    $region7: #{tpu_custom_call.1} parent=1 // pred_check_branch
      %11 = sbr.rel (0) target = $region9
    $region8: #{tpu_custom_call.1} parent=1 // pred_region
      _
    $region9: #{tpu_custom_call.1} parent=1 // pred_fallthru
      _
    %v12 = vld [vmem:[%s1] sm:$0xff]
    %v13 = vrcp.pop %v12
    %v14 = vmul.f32 %v12, %v13
    %v15 = vsub.f32 1.0, %v14
    %v16 = vmul.f32 %v13, %v15
    %v17 = vadd.f32 %v13, %v16
    %vm18 = vweird.f32 %v12
    %vm19 = vweird.f32 %v13
    %vm20 = vmor %vm18, %vm19
    %v21 = vsel %vm20, %v13, %v17
    %v22 = vand.u32 2147483647, %v12
    %vm23 = vcmp.eq.f32.partialorder %v22, 8.507059e+37
    %v24 = vand.u32 %v12, 2147483648
    %v25 = vor.u32 1.1754944e-38, %v24
    %v26 = vsel %vm23, %v25, %v21
    %v27 = vld [vmem:[%s0] sm:$0xff]
    %29 = vset.pattern.permute.xlu0 0
    %30 = vperm.xlu0 %29, %v12
    %v31 = vpop.permute.xlu0 %30
    %v33 = vmul.f32 %v31, %v27
    %v34 = vand.u32 2147483647, %v33
    %vm35 = vcmp.le.f32.partialorder %v34, 0.7853982
    %vm36 = vcmp.lt.s32.totalorder %v33, 0
    %v37 = vand.u32 %v33, 2139095040
    %v38 = vshrl.u32 %v37, 23
    %v39 = vsub.s32 %v38, 127
    %v40 = vand.u32 2147483647, %v33
    %v41 = vand.u32 %v40, 8388607
    %v42 = vor.u32 %v41, 8388608
    %v43 = vsub.s32 0, %v42
    %v44 = vadd.s32 %v39, 1
    %vm45 = vcmp.gt.s32.totalorder %v44, 0
    %v46 = vsel %vm45, %v44, 0
    %v47 = vshrl.u32 %v46, 5
    %v48 = vand.u32 %v46, 31
    %v49 = vsub.s32 32, %v48
    %v50 = vshrl.u32 683565275, %v49
    %v51 = vshll.u32 683565275, %v48
    %v52 = vshrl.u32 2475754826, %v49
    %v53 = vor.u32 %v51, %v52
    %v54 = vshll.u32 2475754826, %v48
    %v55 = vshrl.u32 2131351028, %v49
    %v56 = vor.u32 %v54, %v55
    %v57 = vshll.u32 2131351028, %v48
    %v58 = vshrl.u32 2102212464, %v49
    %v59 = vor.u32 %v57, %v58
    %v60 = vshll.u32 2102212464, %v48
    %v61 = vshrl.u32 920167782, %v49
    %v62 = vor.u32 %v60, %v61
    %v63 = vshll.u32 920167782, %v48
    %v64 = vshrl.u32 1326507024, %v49
    %v65 = vor.u32 %v63, %v64
    %vm66 = vcmp.lt.s32.totalorder %v47, 1
    %vm67 = vcmp.lt.s32.totalorder %v47, 2
    %vm68 = vcmp.lt.s32.totalorder %v47, 3
    %vm69 = vcmp.lt.s32.totalorder %v47, 4
    %v70 = vsel %vm66, %v50, %v53
    %v71 = vsel %vm69, %v59, 2102212464
    %v72 = vsel %vm68, %v56, %v71
    %v73 = vsel %vm67, %v70, %v72
    %v74 = vsel %vm66, %v53, %v56
    %v75 = vsel %vm69, %v62, 920167782
    %v76 = vsel %vm68, %v59, %v75
    %v77 = vsel %vm67, %v74, %v76
    %v78 = vsel %vm66, %v56, %v59
    %v79 = vsel %vm69, %v65, 1326507024
    %v80 = vsel %vm68, %v62, %v79
    %v81 = vsel %vm67, %v78, %v80
    %v82 = vshll.u32 %v42, 8
    %v83 = vand.u32 %v82, 65535
    %v84 = vshrl.u32 %v82, 16
    %v85 = vand.u32 %v81, 65535
    %v86 = vshrl.u32 %v81, 16
    %v87 = vmul.u32 %v83, %v85
    %v88 = vmul.u32 %v83, %v86
    %v89 = vmul.u32 %v84, %v85
    %v90 = vmul.u32 %v84, %v86
    %v91 = vshll.u32 %v88, 16
    %v92 = vshrl.u32 %v88, 16
    %v93 = vshll.u32 %v89, 16
    %v94 = vshrl.u32 %v89, 16
    %vm95 = vc.u32 %v87, %v91
    %v96 = vsel %vm95, 1, 0
    %v97 = vadd.s32 %v87, %v91
    %v98 = vadd.s32 %v90, %v96
    %vm99 = vc.u32 %v97, %v93
    %v100 = vsel %vm99, 1, 0
    %v101 = vadd.s32 %v97, %v93
    %v102 = vadd.s32 %v98, %v100
    %v103 = vadd.s32 %v102, %v92
    %v104 = vadd.s32 %v103, %v94
    %v105 = vand.u32 %v82, 65535
    %v106 = vshrl.u32 %v82, 16
    %v107 = vand.u32 %v77, 65535
    %v108 = vshrl.u32 %v77, 16
    %v109 = vmul.u32 %v105, %v107
    %v110 = vmul.u32 %v105, %v108
    %v111 = vmul.u32 %v106, %v107
    %v112 = vmul.u32 %v106, %v108
    %v113 = vshll.u32 %v110, 16
    %v114 = vshrl.u32 %v110, 16
    %v115 = vshll.u32 %v111, 16
    %v116 = vshrl.u32 %v111, 16
    %vm117 = vc.u32 %v109, %v113
    %v118 = vsel %vm117, 1, 0
    %v119 = vadd.s32 %v109, %v113
    %v120 = vadd.s32 %v112, %v118
    %vm121 = vc.u32 %v119, %v115
    %v122 = vsel %vm121, 1, 0
    %v123 = vadd.s32 %v119, %v115
    %v124 = vadd.s32 %v120, %v122
    %v125 = vadd.s32 %v124, %v114
    %v126 = vadd.s32 %v125, %v116
    %v127 = vmul.u32 %v82, %v73
    %v128 = vadd.s32 %v104, %v123
    %vm129 = vc.u32 %v104, %v123
    %v130 = vadd.s32 %v126, 1
    %v131 = vsel %vm129, %v130, %v126
    %v132 = vadd.s32 %v127, %v131
    %v133 = vadd.s32 %v132, 536870912
    %v134 = vshrl.u32 %v133, 30
    %v135 = vshll.u32 %v134, 30
    %v136 = vsub.s32 %v132, %v135
    %vm137 = vcmp.lt.s32.totalorder %v136, 0
    %v138 = vsub.s32 0, %v136
    %v139 = vsel %vm137, %v138, %v136
    %v140 = vclz %v139
    %v141 = vsub.s32 %v140, 2
    %vm142 = vcmp.gt.s32.totalorder 0, %v141
    %v143 = vsel %vm142, 0, %v141
    %v144 = vsub.s32 32, %v143
    %v145 = vshll.u32 %v136, %v143
    %v146 = vshrl.u32 %v128, %v144
    %v147 = vor.u32 %v145, %v146
    %v148 = vsub.s32 4294967266, %v143
    %v149 = vadd.s32 %v148, 127
    %v150 = vshll.u32 %v149, 23
    %v151 = vor.u32 4788187, %v150
    %v152 = vand.u32 2147483647, %v151
    %v154 = vcvt.s32.f32 %v147
    %v155 = vmul.f32 %v154, %v152
    %v156 = vxor.u32 %v155, 2147483648
    %v157 = vsel %vm36, %v156, %v155
    %v158 = vsub.s32 4, %v134
    %v159 = vsel %vm36, %v158, %v134
    %v160 = vsel %vm35, %v33, %v157
    %v161 = vsel %vm35, 0, %v159
    %v162 = vmul.f32 %v160, %v160
    %v163 = vmul.f32 %v162, -0.001358992
    %v164 = vadd.f32 %v163, 0.041655596
    %v165 = vmul.f32 %v162, %v164
    %v166 = vadd.f32 %v165, -0.4999988
    %v167 = vmul.f32 %v162, %v166
    %v168 = vadd.f32 1.0, %v167
    %v169 = vmul.f32 %v160, %v160
    %v170 = vmul.f32 %v169, -0.00019511016
    %v171 = vadd.f32 %v170, 0.008332121
    %v172 = vmul.f32 %v169, %v171
    %v173 = vadd.f32 %v172, -0.16666654
    %v174 = vmul.f32 %v169, %v173
    %v175 = vadd.f32 %v174, 1.0
    %v176 = vmul.f32 %v175, %v160
    %vm177 = vweird.f32 %v33
    %v178 = vadd.s32 %v161, 3
    %v179 = vand.u32 %v178, 3
    %vm180 = vcmp.lt.s32.totalorder %v179, 2
    %vm181 = vcmp.eq.s32.totalorder %v179, 0
    %v182 = vxor.u32 %v176, 2147483648
    %v183 = vsel %vm181, %v168, %v182
    %vm184 = vcmp.eq.s32.totalorder %v179, 2
    %v185 = vxor.u32 %v168, 2147483648
    %v186 = vsel %vm184, %v185, %v176
    %v187 = vsel %vm180, %v183, %v186
    %v188 = vsel %vm177, nan, %v187
    %v189 = vmul.f32 %v188, %v188
    %191 = vset.pattern.permute.xlu0 0
    %192 = vperm.xlu0 %191, %v26
    %v193 = vpop.permute.xlu0 %192
    %v195 = vmul.f32 %v189, %v193
    %v196 = vadd.f32 %v27, %v195
    %vm197 = vcmask 130048
    %198 = vst.msk [vmem:[#allocation2] sm:$0xff] %vm197, %v196
    // Predicated region
    $region10: #{tpu_custom_call.1} parent=1 // pred_check
      _
    $region11: #{tpu_custom_call.1} parent=1 // pred_check_branch
      %200 = sbr.rel (0) target = $region13
    $region12: #{tpu_custom_call.1} parent=1 // pred_region
      %202 = vsyncadd [#allocation3], 0
      %s204 = sshll.u32 [#allocation2], 4
      %s205 = int_to_ptr.vmem [resolvable:$true] %s204
      %s206 = sshll.u32 %s2, 4
      %s207 = int_to_ptr.hbm [resolvable:$true] %s206
      %209 = dma.vmem_to_hbm [thread:$0]  %s205, 128, %s207, [#allocation3]
    $region13: #{tpu_custom_call.1} parent=1 // pred_fallthru
      _
    // Predicated region
    $region14: #{tpu_custom_call.1} parent=1 // pred_check
      _
    $region15: #{tpu_custom_call.1} parent=1 // pred_check_branch
      %211 = sbr.rel (0) target = $region17
    $region16: #{tpu_custom_call.1} parent=1 // pred_region
      %213 = dma.done [#allocation3], 128
    $region17: #{tpu_custom_call.1} parent=1 // pred_fallthru
      _
    %214 = vsyncpa [#allocation3], 1

</llo_original>
